<compile_context>
chip_gen: v7x
topology: tpu7x:2x2x1
jax: 0.10.0
libtpu: 0.0.40
codegen_flags: <defaults>
</compile_context>

<pallas_src>
import functools

import jax
import jax.numpy as jnp
from jax.experimental import pallas as pl
from jax.experimental.pallas import tpu as pltpu

_INV_SQRT2 = 0.7071067811865476


def _ffn_kernel(x_ref, gamma_ref, beta_ref, w1_ref, b1_ref, w2_ref, b2_ref,
                o_ref, *scratch, eps, approx_gelu, acc_in_out):
    xn_ref = scratch[0]
    acc_ref = o_ref if acc_in_out else scratch[1]

    h_idx = pl.program_id(1)
    n_h = pl.num_programs(1)

    @pl.when(h_idx == 0)
    def _():
        # LayerNorm over the last axis in f32 (biased variance, as nn.LayerNorm).
        x = x_ref[...].astype(jnp.float32)
        mean = jnp.mean(x, axis=-1, keepdims=True)
        xc = x - mean
        var = jnp.mean(xc * xc, axis=-1, keepdims=True)
        xn = xc * jax.lax.rsqrt(var + eps)
        xn = xn * gamma_ref[...].astype(jnp.float32) + beta_ref[...].astype(jnp.float32)
        xn_ref[...] = xn.astype(xn_ref.dtype)   # cache bf16 MXU input once per row tile
        acc_ref[...] = jnp.zeros_like(acc_ref)

    # Linear 1 (hidden slice): (TM, D) @ (D, TH), bf16 in / f32 accumulate.
    h = jnp.dot(xn_ref[...], w1_ref[...], preferred_element_type=jnp.float32)
    h = h + b1_ref[...].astype(jnp.float32)

    if approx_gelu:
        # tanh-form GELU: transcendental runs on the otherwise-idle EUP slot
        # (relieves the VALU on v6e/v7x); max |delta| vs exact erf GELU ~1e-3.
        h = jax.nn.gelu(h, approximate=True)
    else:
        # Exact erf GELU (nn.GELU() default).
        h = 0.5 * h * (1.0 + jax.lax.erf(h * _INV_SQRT2))

    # Dropout(p=0.0) -> identity.
    # TODO(synk): training-mode dropout (p > 0) would need pltpu.prng_* masking.

    # Linear 2 partial: (TM, TH) @ (TH, D), accumulated in f32.
    acc_ref[...] += jnp.dot(h.astype(w2_ref.dtype), w2_ref[...],
                            preferred_element_type=jnp.float32)

    @pl.when(h_idx == n_h - 1)
    def _():
        o_ref[...] = (acc_ref[...] + b2_ref[...].astype(jnp.float32)).astype(o_ref.dtype)


def _round_up(v, m):
    return ((v + m - 1) // m) * m


def _vmem_capacity_bytes():
    try:
        info = pltpu.get_tpu_info()
        cap = getattr(info, "vmem_capacity_bytes", None)
        if cap:
            return int(cap)
    except Exception:
        pass
    return 64 * 1024 * 1024   # conservative fallback = v7x per-TensorCore VMEM


def feed_forward(x, gamma, beta, w1, b1, w2, b2, *,
                 eps=1e-5, row_tile=None, hidden_tile=None, approximate_gelu=True):
    """x: (batch, seq, dim) -> (batch, seq, dim).  w1: (dim, hidden), w2: (hidden, dim)."""
    B, S, D = x.shape
    H = w1.shape[1]
    rows = B * S
    out_dtype = x.dtype
    acc_in_out = (x.dtype == jnp.float32)      # accumulate directly into o_ref if f32

    # ---- generation-aware VMEM budget -------------------------------------
    vmem_cap = _vmem_capacity_bytes()          # 64 MiB/TC on v7x, 128 MiB v5e/v6e
    vmem_budget = (vmem_cap * 3) // 4          # headroom for Mosaic internal scratch

    # ---- hidden tiling: keep W1/W2 VMEM-resident whenever they fit --------
    weight_bytes = 2 * (2 * D * H)             # bf16 W1 + W2 slabs, single-buffered
    if hidden_tile is None:
        if weight_bytes <= vmem_budget // 3:
            th = H                             # resident: fetched from HBM exactly once
        else:
            th = H
            for cand in (1024, 512, 256, 128):
                if H % cand == 0:
                    th = cand
                    break
    else:
        th = hidden_tile if (hidden_tile <= H and H % hidden_tile == 0) else H
    n_h = H // th
    weights_resident = (n_h == 1)

    # ---- row tiling --------------------------------------------------------
    if row_tile is None:
        row_tile = 512 if vmem_cap <= 64 * 1024 * 1024 else 1024
    tm = max(16, (min(row_tile, _round_up(rows, 16)) // 16) * 16)
    # v7x shards the "parallel" axis over 2 TensorCores: ensure >= 2 row tiles
    # whenever the row count allows it (harmless on single-TC v5e/v6e).
    if pl.cdiv(rows, tm) < 2 and rows > 16:
        tm = max(16, _round_up(-(-rows // 2), 16))

    x_bytes = x.dtype.itemsize
    o_bytes = out_dtype.itemsize

    def _est_vmem(tm_):
        act = 2 * tm_ * D * (x_bytes + o_bytes)             # double-buffered in/out tiles
        scr = tm_ * D * (2 + (0 if acc_in_out else 4))      # bf16 xn cache + optional f32 acc
        wts = (1 if weights_resident else 2) * 4 * D * th   # bf16 W1/W2 slabs x buffers
        return act + scr + wts

    while _est_vmem(tm) > vmem_budget and tm > 32:
        tm = max(32, ((tm // 2) // 16) * 16)

    grid = (pl.cdiv(rows, tm), n_h)

    # ---- operands ----------------------------------------------------------
    x2d = x.reshape(rows, D)                   # free reshape; no padding copy
    w1_b = w1.astype(jnp.bfloat16)             # native MXU dtype, halves weight traffic
    w2_b = w2.astype(jnp.bfloat16)
    gamma2 = gamma.reshape(1, D).astype(jnp.float32)
    beta2 = beta.reshape(1, D).astype(jnp.float32)
    b1_2 = b1.reshape(1, H).astype(jnp.float32)
    b2_2 = b2.reshape(1, D).astype(jnp.float32)

    scratch_shapes = [pltpu.VMEM((tm, D), jnp.bfloat16)]         # cached LayerNorm output
    if not acc_in_out:
        scratch_shapes.append(pltpu.VMEM((tm, D), jnp.float32))  # f32 accumulator

    kernel = functools.partial(_ffn_kernel, eps=eps,
                               approx_gelu=approximate_gelu, acc_in_out=acc_in_out)

    def _run(single_buffer_invariants):
        def inv_spec(shape, index_map):
            if single_buffer_invariants:
                # Grid-invariant block: fetched once, no double buffer in VMEM.
                return pl.BlockSpec(shape, index_map, pipeline_mode=pl.Buffered(1))
            return pl.BlockSpec(shape, index_map)

        # W1/W2/b1 are grid-invariant only when fully resident (n_h == 1).
        w_spec = inv_spec if weights_resident else (lambda s, m: pl.BlockSpec(s, m))

        grid_spec = pltpu.PrefetchScalarGridSpec(
            num_scalar_prefetch=0,
            grid=grid,
            in_specs=[
                pl.BlockSpec((tm, D), lambda i, h: (i, 0)),    # x row tile
                inv_spec((1, D), lambda i, h: (0, 0)),         # gamma
                inv_spec((1, D), lambda i, h: (0, 0)),         # beta
                w_spec((D, th), lambda i, h: (0, h)),          # W1 hidden slice
                w_spec((1, th), lambda i, h: (0, h)),          # b1 hidden slice
                w_spec((th, D), lambda i, h: (h, 0)),          # W2 hidden slice
                inv_spec((1, D), lambda i, h: (0, 0)),         # b2
            ],
            out_specs=pl.BlockSpec((tm, D), lambda i, h: (i, 0)),
            scratch_shapes=scratch_shapes,
        )
        return pl.pallas_call(
            kernel,
            out_shape=jax.ShapeDtypeStruct((rows, D), out_dtype),
            grid_spec=grid_spec,
            compiler_params=pltpu.CompilerParams(
                dimension_semantics=("parallel", "arbitrary"),
                vmem_limit_bytes=int(vmem_budget),
            ),
        )(x2d, gamma2, beta2, w1_b, b1_2, w2_b, b2_2)

    try:
        out2d = _run(True)
    except Exception:
        # pipeline_mode=pl.Buffered(1) unsupported on this JAX build -> default buffering.
        out2d = _run(False)

    return out2d.reshape(B, S, D)


def _reference(x, gamma, beta, w1, b1, w2, b2, *, eps=1e-5, approximate_gelu=True):
    """Pure-JAX reference with the kernel's dtype policy (bf16 MXU inputs, f32 accum)."""
    xf = x.astype(jnp.float32)
    mean = jnp.mean(xf, axis=-1, keepdims=True)
    var = jnp.mean((xf - mean) ** 2, axis=-1, keepdims=True)
    xn = (xf - mean) * jax.lax.rsqrt(var + eps) * gamma.astype(jnp.float32) \
         + beta.astype(jnp.float32)
    h = jnp.dot(xn.astype(jnp.bfloat16), w1.astype(jnp.bfloat16),
                preferred_element_type=jnp.float32) + b1.astype(jnp.float32)
    if approximate_gelu:
        h = jax.nn.gelu(h, approximate=True)
    else:
        h = 0.5 * h * (1.0 + jax.lax.erf(h * _INV_SQRT2))
    out = jnp.dot(h.astype(jnp.bfloat16), w2.astype(jnp.bfloat16),
                  preferred_element_type=jnp.float32) + b2.astype(jnp.float32)
    return out.astype(x.dtype)


def _make_params(key, D, H):
    kw1, kb1, kw2, kb2 = jax.random.split(key, 4)
    gamma = jnp.ones((D,), jnp.float32)
    beta = jnp.zeros((D,), jnp.float32)
    w1 = jax.random.normal(kw1, (D, H), dtype=jnp.float32) * (1.0 / jnp.sqrt(D))
    b1 = jax.random.normal(kb1, (H,), dtype=jnp.float32) * 0.01
    w2 = jax.random.normal(kw2, (H, D), dtype=jnp.float32) * (1.0 / jnp.sqrt(H))
    b2 = jax.random.normal(kb2, (D,), dtype=jnp.float32) * 0.01
    return gamma, beta, w1, b1, w2, b2


if __name__ == "__main__":
    key = jax.random.PRNGKey(0)
    k1, k2, k3, k4, k5, k6 = jax.random.split(key, 6)

    # Case 1: small ViT-ish shapes; resident weights, tanh GELU (defaults).
    B, S, D, H = 2, 8, 32, 64
    x = jax.random.normal(k1, (B, S, D), dtype=jnp.float32)
    params = _make_params(k2, D, H)
    out = jax.block_until_ready(feed_forward(x, *params))
    ref = _reference(x, *params)
    assert out.shape == (B, S, D)
    assert jnp.allclose(out, ref, atol=5e-3, rtol=5e-3), "mismatch vs reference (case 1)"

    # Case 2: ragged rows (seq=197 -> partial last row tile, >=2 tiles on the
    # parallel axis), forced hidden-dim tiling (n_h=2) and exact erf GELU.
    B2, S2, D2, H2 = 1, 197, 128, 256
    x2 = jax.random.normal(k3, (B2, S2, D2), dtype=jnp.float32)
    params2 = _make_params(k4, D2, H2)
    out2 = jax.block_until_ready(
        feed_forward(x2, *params2, hidden_tile=128, approximate_gelu=False))
    ref2 = _reference(x2, *params2, approximate_gelu=False)
    assert out2.shape == (B2, S2, D2)
    assert jnp.allclose(out2, ref2, atol=1e-2, rtol=1e-2), "mismatch vs reference (case 2)"

    # Case 3: bf16 activations in/out (exercises the f32 acc-scratch path).
    B3, S3, D3, H3 = 2, 8, 64, 128
    x3 = jax.random.normal(k5, (B3, S3, D3), dtype=jnp.float32).astype(jnp.bfloat16)
    params3 = _make_params(k6, D3, H3)
    out3 = jax.block_until_ready(feed_forward(x3, *params3))
    ref3 = _reference(x3, *params3)
    assert out3.shape == (B3, S3, D3)
    assert out3.dtype == jnp.bfloat16
    assert jnp.allclose(out3.astype(jnp.float32), ref3.astype(jnp.float32),
                        atol=2.5e-2, rtol=2.5e-2), "mismatch vs reference (case 3)"

    print("KERNEL_OK")
</pallas_src>

<mosaic_0001>
module attributes {stable_mosaic.version = 11 : i64} {
  func.func @_ffn_kernel(%arg0: i32, %arg1: i32, %arg2: memref<16x32xf32, #tpu.memory_space<vmem>>, %arg3: memref<1x32xf32, #tpu.memory_space<vmem>>, %arg4: memref<1x32xf32, #tpu.memory_space<vmem>>, %arg5: memref<32x64xbf16, #tpu.memory_space<vmem>>, %arg6: memref<1x64xf32, #tpu.memory_space<vmem>>, %arg7: memref<64x32xbf16, #tpu.memory_space<vmem>>, %arg8: memref<1x32xf32, #tpu.memory_space<vmem>>, %arg9: memref<16x32xf32, #tpu.memory_space<vmem>>, %arg10: memref<16x32xbf16, #tpu.memory_space<vmem>>) attributes {dimension_semantics = [#tpu.dimension_semantics<parallel>, #tpu.dimension_semantics<arbitrary>], iteration_bounds = array<i64: 1, 1>, scalar_prefetch = 0 : i64, scratch_operands = 1 : i64, tpu.core_type = #tpu.core_type<tc>, window_params = [{transform_indices = @transform_0, window_bounds = array<i64: 16, 32>}, {pipeline_mode = #tpu.pipeline_mode<synchronous>, transform_indices = @transform_1, window_bounds = array<i64: 1, 32>}, {pipeline_mode = #tpu.pipeline_mode<synchronous>, transform_indices = @transform_2, window_bounds = array<i64: 1, 32>}, {pipeline_mode = #tpu.pipeline_mode<synchronous>, transform_indices = @transform_3, window_bounds = array<i64: 32, 64>}, {pipeline_mode = #tpu.pipeline_mode<synchronous>, transform_indices = @transform_4, window_bounds = array<i64: 1, 64>}, {pipeline_mode = #tpu.pipeline_mode<synchronous>, transform_indices = @transform_5, window_bounds = array<i64: 64, 32>}, {pipeline_mode = #tpu.pipeline_mode<synchronous>, transform_indices = @transform_6, window_bounds = array<i64: 1, 32>}, {transform_indices = @transform_7, window_bounds = array<i64: 16, 32>}]} {
    %c0_i32 = arith.constant 0 : i32
    %0 = arith.cmpi eq, %arg1, %c0_i32 : i32
    %1 = arith.extui %0 : i1 to i32
    %c0_i32_0 = arith.constant 0 : i32
    %2 = arith.cmpi ne, %1, %c0_i32_0 : i32
    scf.if %2 {
      %c0_19 = arith.constant 0 : index
      %c0_20 = arith.constant 0 : index
      %31 = vector.load %arg2[%c0_19, %c0_20] : memref<16x32xf32, #tpu.memory_space<vmem>>, vector<16x32xf32>
      %cst_21 = arith.constant dense<0.000000e+00> : vector<16xf32>
      %32 = vector.multi_reduction <add>, %31, %cst_21 [1] : vector<16x32xf32> to vector<16xf32>
      %33 = vector.shape_cast %32 : vector<16xf32> to vector<16x1xf32>
      %cst_22 = arith.constant 3.200000e+01 : f32
      %34 = vector.broadcast %cst_22 : f32 to vector<16x1xf32>
      %35 = arith.divf %33, %34 : vector<16x1xf32>
      %36 = vector.broadcast %35 : vector<16x1xf32> to vector<16x32xf32>
      %37 = arith.subf %31, %36 : vector<16x32xf32>
      %38 = arith.mulf %37, %37 : vector<16x32xf32>
      %cst_23 = arith.constant dense<0.000000e+00> : vector<16xf32>
      %39 = vector.multi_reduction <add>, %38, %cst_23 [1] : vector<16x32xf32> to vector<16xf32>
      %40 = vector.shape_cast %39 : vector<16xf32> to vector<16x1xf32>
      %cst_24 = arith.constant 3.200000e+01 : f32
      %41 = vector.broadcast %cst_24 : f32 to vector<16x1xf32>
      %42 = arith.divf %40, %41 : vector<16x1xf32>
      %cst_25 = arith.constant 9.99999974E-6 : f32
      %43 = vector.broadcast %cst_25 : f32 to vector<16x1xf32>
      %44 = arith.addf %42, %43 : vector<16x1xf32>
      %45 = math.rsqrt %44 : vector<16x1xf32>
      %46 = vector.broadcast %45 : vector<16x1xf32> to vector<16x32xf32>
      %47 = arith.mulf %37, %46 : vector<16x32xf32>
      %c0_26 = arith.constant 0 : index
      %c0_27 = arith.constant 0 : index
      %48 = vector.load %arg3[%c0_26, %c0_27] : memref<1x32xf32, #tpu.memory_space<vmem>>, vector<1x32xf32>
      %49 = vector.broadcast %48 : vector<1x32xf32> to vector<16x32xf32>
      %50 = arith.mulf %47, %49 : vector<16x32xf32>
      %c0_28 = arith.constant 0 : index
      %c0_29 = arith.constant 0 : index
      %51 = vector.load %arg4[%c0_28, %c0_29] : memref<1x32xf32, #tpu.memory_space<vmem>>, vector<1x32xf32>
      %52 = vector.broadcast %51 : vector<1x32xf32> to vector<16x32xf32>
      %53 = arith.addf %50, %52 : vector<16x32xf32>
      %54 = arith.truncf %53 : vector<16x32xf32> to vector<16x32xbf16>
      %c0_30 = arith.constant 0 : index
      %c0_31 = arith.constant 0 : index
      %55 = vector.load %arg10[%c0_30, %c0_31] : memref<16x32xbf16, #tpu.memory_space<vmem>>, vector<16x32xbf16>
      tpu.vector_store %arg10[%c0_30, %c0_31], %54 {strides = array<i32>} : memref<16x32xbf16, #tpu.memory_space<vmem>>, vector<16x32xbf16>,
      %cst_32 = arith.constant 0.000000e+00 : f32
      %56 = vector.broadcast %cst_32 : f32 to vector<16x32xf32>
      %c0_33 = arith.constant 0 : index
      %c0_34 = arith.constant 0 : index
      %57 = vector.load %arg9[%c0_33, %c0_34] : memref<16x32xf32, #tpu.memory_space<vmem>>, vector<16x32xf32>
      tpu.vector_store %arg9[%c0_33, %c0_34], %56 {strides = array<i32>} : memref<16x32xf32, #tpu.memory_space<vmem>>, vector<16x32xf32>,
    } else {
    }
    %c0 = arith.constant 0 : index
    %c0_1 = arith.constant 0 : index
    %3 = vector.load %arg10[%c0, %c0_1] : memref<16x32xbf16, #tpu.memory_space<vmem>>, vector<16x32xbf16>
    %c0_2 = arith.constant 0 : index
    %c0_3 = arith.constant 0 : index
    %4 = vector.load %arg5[%c0_2, %c0_3] : memref<32x64xbf16, #tpu.memory_space<vmem>>, vector<32x64xbf16>
    %cst = arith.constant dense<0.000000e+00> : vector<16x64xf32>
    %5 = tpu.matmul %3, %4, %cst {dimension_numbers = #tpu.dot_dimension_numbers<[1], [0], [0], [1], [0, 0, 1, 1], [], []>} : vector<16x32xbf16>, vector<32x64xbf16>, vector<16x64xf32> -> vector<16x64xf32>
    %c0_4 = arith.constant 0 : index
    %c0_5 = arith.constant 0 : index
    %6 = vector.load %arg6[%c0_4, %c0_5] : memref<1x64xf32, #tpu.memory_space<vmem>>, vector<1x64xf32>
    %7 = vector.broadcast %6 : vector<1x64xf32> to vector<16x64xf32>
    %8 = arith.addf %5, %7 : vector<16x64xf32>
    %9 = arith.mulf %8, %8 : vector<16x64xf32>
    %10 = arith.mulf %8, %9 : vector<16x64xf32>
    %cst_6 = arith.constant 4.471500e-02 : f32
    %11 = vector.broadcast %cst_6 : f32 to vector<16x64xf32>
    %12 = arith.mulf %11, %10 : vector<16x64xf32>
    %13 = arith.addf %8, %12 : vector<16x64xf32>
    %cst_7 = arith.constant 0.797884583 : f32
    %14 = vector.broadcast %cst_7 : f32 to vector<16x64xf32>
    %15 = arith.mulf %14, %13 : vector<16x64xf32>
    %16 = math.tanh %15 : vector<16x64xf32>
    %cst_8 = arith.constant 1.000000e+00 : f32
    %17 = vector.broadcast %cst_8 : f32 to vector<16x64xf32>
    %18 = arith.addf %17, %16 : vector<16x64xf32>
    %cst_9 = arith.constant 5.000000e-01 : f32
    %19 = vector.broadcast %cst_9 : f32 to vector<16x64xf32>
    %20 = arith.mulf %19, %18 : vector<16x64xf32>
    %21 = arith.mulf %8, %20 : vector<16x64xf32>
    %c0_10 = arith.constant 0 : index
    %c0_11 = arith.constant 0 : index
    %22 = vector.load %arg9[%c0_10, %c0_11] : memref<16x32xf32, #tpu.memory_space<vmem>>, vector<16x32xf32>
    %23 = arith.truncf %21 : vector<16x64xf32> to vector<16x64xbf16>
    %c0_12 = arith.constant 0 : index
    %c0_13 = arith.constant 0 : index
    %24 = vector.load %arg7[%c0_12, %c0_13] : memref<64x32xbf16, #tpu.memory_space<vmem>>, vector<64x32xbf16>
    %cst_14 = arith.constant dense<0.000000e+00> : vector<16x32xf32>
    %25 = tpu.matmul %23, %24, %cst_14 {dimension_numbers = #tpu.dot_dimension_numbers<[1], [0], [0], [1], [0, 0, 1, 1], [], []>} : vector<16x64xbf16>, vector<64x32xbf16>, vector<16x32xf32> -> vector<16x32xf32>
    %26 = arith.addf %22, %25 : vector<16x32xf32>
    %c0_15 = arith.constant 0 : index
    %c0_16 = arith.constant 0 : index
    %27 = vector.load %arg9[%c0_15, %c0_16] : memref<16x32xf32, #tpu.memory_space<vmem>>, vector<16x32xf32>
    tpu.vector_store %arg9[%c0_15, %c0_16], %26 {strides = array<i32>} : memref<16x32xf32, #tpu.memory_space<vmem>>, vector<16x32xf32>,
    %c0_i32_17 = arith.constant 0 : i32
    %28 = arith.cmpi eq, %arg1, %c0_i32_17 : i32
    %29 = arith.extui %28 : i1 to i32
    %c0_i32_18 = arith.constant 0 : i32
    %30 = arith.cmpi ne, %29, %c0_i32_18 : i32
    scf.if %30 {
      %c0_19 = arith.constant 0 : index
      %c0_20 = arith.constant 0 : index
      %31 = vector.load %arg9[%c0_19, %c0_20] : memref<16x32xf32, #tpu.memory_space<vmem>>, vector<16x32xf32>
      %c0_21 = arith.constant 0 : index
      %c0_22 = arith.constant 0 : index
      %32 = vector.load %arg8[%c0_21, %c0_22] : memref<1x32xf32, #tpu.memory_space<vmem>>, vector<1x32xf32>
      %33 = vector.broadcast %32 : vector<1x32xf32> to vector<16x32xf32>
      %34 = arith.addf %31, %33 : vector<16x32xf32>
      %c0_23 = arith.constant 0 : index
      %c0_24 = arith.constant 0 : index
      %35 = vector.load %arg9[%c0_23, %c0_24] : memref<16x32xf32, #tpu.memory_space<vmem>>, vector<16x32xf32>
      tpu.vector_store %arg9[%c0_23, %c0_24], %34 {strides = array<i32>} : memref<16x32xf32, #tpu.memory_space<vmem>>, vector<16x32xf32>,
    } else {
    }
    return
  }
  func.func @transform_0(%arg0: i32, %arg1: i32) -> (i32, i32) {
    %c0_i32 = arith.constant 0 : i32
    %c0_i32_0 = arith.constant 0 : i32
    return %arg0, %c0_i32 : i32, i32
  }
  func.func @transform_1(%arg0: i32, %arg1: i32) -> (i32, i32) {
    %c0_i32 = arith.constant 0 : i32
    %c0_i32_0 = arith.constant 0 : i32
    %c0_i32_1 = arith.constant 0 : i32
    return %c0_i32, %c0_i32_0 : i32, i32
  }
  func.func @transform_2(%arg0: i32, %arg1: i32) -> (i32, i32) {
    %c0_i32 = arith.constant 0 : i32
    %c0_i32_0 = arith.constant 0 : i32
    %c0_i32_1 = arith.constant 0 : i32
    return %c0_i32, %c0_i32_0 : i32, i32
  }
  func.func @transform_3(%arg0: i32, %arg1: i32) -> (i32, i32) {
    %c0_i32 = arith.constant 0 : i32
    %c0_i32_0 = arith.constant 0 : i32
    return %c0_i32, %arg1 : i32, i32
  }
  func.func @transform_4(%arg0: i32, %arg1: i32) -> (i32, i32) {
    %c0_i32 = arith.constant 0 : i32
    %c0_i32_0 = arith.constant 0 : i32
    return %c0_i32, %arg1 : i32, i32
  }
  func.func @transform_5(%arg0: i32, %arg1: i32) -> (i32, i32) {
    %c0_i32 = arith.constant 0 : i32
    %c0_i32_0 = arith.constant 0 : i32
    return %arg1, %c0_i32 : i32, i32
  }
  func.func @transform_6(%arg0: i32, %arg1: i32) -> (i32, i32) {
    %c0_i32 = arith.constant 0 : i32
    %c0_i32_0 = arith.constant 0 : i32
    %c0_i32_1 = arith.constant 0 : i32
    return %c0_i32, %c0_i32_0 : i32, i32
  }
  func.func @transform_7(%arg0: i32, %arg1: i32) -> (i32, i32) {
    %c0_i32 = arith.constant 0 : i32
    %c0_i32_0 = arith.constant 0 : i32
    return %arg0, %c0_i32 : i32, i32
  }
}

module attributes {stable_mosaic.version = 11 : i64} {
  func.func @_ffn_kernel(%arg0: i32, %arg1: i32, %arg2: memref<16x32xf32, #tpu.memory_space<vmem>>, %arg3: memref<1x32xf32, #tpu.memory_space<vmem>>, %arg4: memref<1x32xf32, #tpu.memory_space<vmem>>, %arg5: memref<32x64xbf16, #tpu.memory_space<vmem>>, %arg6: memref<1x64xf32, #tpu.memory_space<vmem>>, %arg7: memref<64x32xbf16, #tpu.memory_space<vmem>>, %arg8: memref<1x32xf32, #tpu.memory_space<vmem>>, %arg9: memref<16x32xf32, #tpu.memory_space<vmem>>, %arg10: memref<16x32xbf16, #tpu.memory_space<vmem>>) attributes {dimension_semantics = [#tpu.dimension_semantics<parallel>, #tpu.dimension_semantics<arbitrary>], iteration_bounds = array<i64: 1, 1>, scalar_prefetch = 0 : i64, scratch_operands = 1 : i64, tpu.core_type = #tpu.core_type<tc>, window_params = [{transform_indices = @transform_0, window_bounds = array<i64: 16, 32>}, {pipeline_mode = #tpu.pipeline_mode<synchronous>, transform_indices = @transform_1, window_bounds = array<i64: 1, 32>}, {pipeline_mode = #tpu.pipeline_mode<synchronous>, transform_indices = @transform_2, window_bounds = array<i64: 1, 32>}, {transform_indices = @transform_3, window_bounds = array<i64: 32, 64>}, {transform_indices = @transform_4, window_bounds = array<i64: 1, 64>}, {transform_indices = @transform_5, window_bounds = array<i64: 64, 32>}, {pipeline_mode = #tpu.pipeline_mode<synchronous>, transform_indices = @transform_6, window_bounds = array<i64: 1, 32>}, {transform_indices = @transform_7, window_bounds = array<i64: 16, 32>}]} {
    %c0_i32 = arith.constant 0 : i32
    %0 = arith.cmpi eq, %arg1, %c0_i32 : i32
    %1 = arith.extui %0 : i1 to i32
    %c0_i32_0 = arith.constant 0 : i32
    %2 = arith.cmpi ne, %1, %c0_i32_0 : i32
    scf.if %2 {
      %c0_19 = arith.constant 0 : index
      %c0_20 = arith.constant 0 : index
      %31 = vector.load %arg2[%c0_19, %c0_20] : memref<16x32xf32, #tpu.memory_space<vmem>>, vector<16x32xf32>
      %cst_21 = arith.constant dense<0.000000e+00> : vector<16xf32>
      %32 = vector.multi_reduction <add>, %31, %cst_21 [1] : vector<16x32xf32> to vector<16xf32>
      %33 = vector.shape_cast %32 : vector<16xf32> to vector<16x1xf32>
      %cst_22 = arith.constant 3.200000e+01 : f32
      %34 = vector.broadcast %cst_22 : f32 to vector<16x1xf32>
      %35 = arith.divf %33, %34 : vector<16x1xf32>
      %36 = vector.broadcast %35 : vector<16x1xf32> to vector<16x32xf32>
      %37 = arith.subf %31, %36 : vector<16x32xf32>
      %38 = arith.mulf %37, %37 : vector<16x32xf32>
      %cst_23 = arith.constant dense<0.000000e+00> : vector<16xf32>
      %39 = vector.multi_reduction <add>, %38, %cst_23 [1] : vector<16x32xf32> to vector<16xf32>
      %40 = vector.shape_cast %39 : vector<16xf32> to vector<16x1xf32>
      %cst_24 = arith.constant 3.200000e+01 : f32
      %41 = vector.broadcast %cst_24 : f32 to vector<16x1xf32>
      %42 = arith.divf %40, %41 : vector<16x1xf32>
      %cst_25 = arith.constant 9.99999974E-6 : f32
      %43 = vector.broadcast %cst_25 : f32 to vector<16x1xf32>
      %44 = arith.addf %42, %43 : vector<16x1xf32>
      %45 = math.rsqrt %44 : vector<16x1xf32>
      %46 = vector.broadcast %45 : vector<16x1xf32> to vector<16x32xf32>
      %47 = arith.mulf %37, %46 : vector<16x32xf32>
      %c0_26 = arith.constant 0 : index
      %c0_27 = arith.constant 0 : index
      %48 = vector.load %arg3[%c0_26, %c0_27] : memref<1x32xf32, #tpu.memory_space<vmem>>, vector<1x32xf32>
      %49 = vector.broadcast %48 : vector<1x32xf32> to vector<16x32xf32>
      %50 = arith.mulf %47, %49 : vector<16x32xf32>
      %c0_28 = arith.constant 0 : index
      %c0_29 = arith.constant 0 : index
      %51 = vector.load %arg4[%c0_28, %c0_29] : memref<1x32xf32, #tpu.memory_space<vmem>>, vector<1x32xf32>
      %52 = vector.broadcast %51 : vector<1x32xf32> to vector<16x32xf32>
      %53 = arith.addf %50, %52 : vector<16x32xf32>
      %54 = arith.truncf %53 : vector<16x32xf32> to vector<16x32xbf16>
      %c0_30 = arith.constant 0 : index
      %c0_31 = arith.constant 0 : index
      %55 = vector.load %arg10[%c0_30, %c0_31] : memref<16x32xbf16, #tpu.memory_space<vmem>>, vector<16x32xbf16>
      tpu.vector_store %arg10[%c0_30, %c0_31], %54 {strides = array<i32>} : memref<16x32xbf16, #tpu.memory_space<vmem>>, vector<16x32xbf16>,
      %cst_32 = arith.constant 0.000000e+00 : f32
      %56 = vector.broadcast %cst_32 : f32 to vector<16x32xf32>
      %c0_33 = arith.constant 0 : index
      %c0_34 = arith.constant 0 : index
      %57 = vector.load %arg9[%c0_33, %c0_34] : memref<16x32xf32, #tpu.memory_space<vmem>>, vector<16x32xf32>
      tpu.vector_store %arg9[%c0_33, %c0_34], %56 {strides = array<i32>} : memref<16x32xf32, #tpu.memory_space<vmem>>, vector<16x32xf32>,
    } else {
    }
    %c0 = arith.constant 0 : index
    %c0_1 = arith.constant 0 : index
    %3 = vector.load %arg10[%c0, %c0_1] : memref<16x32xbf16, #tpu.memory_space<vmem>>, vector<16x32xbf16>
    %c0_2 = arith.constant 0 : index
    %c0_3 = arith.constant 0 : index
    %4 = vector.load %arg5[%c0_2, %c0_3] : memref<32x64xbf16, #tpu.memory_space<vmem>>, vector<32x64xbf16>
    %cst = arith.constant dense<0.000000e+00> : vector<16x64xf32>
    %5 = tpu.matmul %3, %4, %cst {dimension_numbers = #tpu.dot_dimension_numbers<[1], [0], [0], [1], [0, 0, 1, 1], [], []>} : vector<16x32xbf16>, vector<32x64xbf16>, vector<16x64xf32> -> vector<16x64xf32>
    %c0_4 = arith.constant 0 : index
    %c0_5 = arith.constant 0 : index
    %6 = vector.load %arg6[%c0_4, %c0_5] : memref<1x64xf32, #tpu.memory_space<vmem>>, vector<1x64xf32>
    %7 = vector.broadcast %6 : vector<1x64xf32> to vector<16x64xf32>
    %8 = arith.addf %5, %7 : vector<16x64xf32>
    %9 = arith.mulf %8, %8 : vector<16x64xf32>
    %10 = arith.mulf %8, %9 : vector<16x64xf32>
    %cst_6 = arith.constant 4.471500e-02 : f32
    %11 = vector.broadcast %cst_6 : f32 to vector<16x64xf32>
    %12 = arith.mulf %11, %10 : vector<16x64xf32>
    %13 = arith.addf %8, %12 : vector<16x64xf32>
    %cst_7 = arith.constant 0.797884583 : f32
    %14 = vector.broadcast %cst_7 : f32 to vector<16x64xf32>
    %15 = arith.mulf %14, %13 : vector<16x64xf32>
    %16 = math.tanh %15 : vector<16x64xf32>
    %cst_8 = arith.constant 1.000000e+00 : f32
    %17 = vector.broadcast %cst_8 : f32 to vector<16x64xf32>
    %18 = arith.addf %17, %16 : vector<16x64xf32>
    %cst_9 = arith.constant 5.000000e-01 : f32
    %19 = vector.broadcast %cst_9 : f32 to vector<16x64xf32>
    %20 = arith.mulf %19, %18 : vector<16x64xf32>
    %21 = arith.mulf %8, %20 : vector<16x64xf32>
    %c0_10 = arith.constant 0 : index
    %c0_11 = arith.constant 0 : index
    %22 = vector.load %arg9[%c0_10, %c0_11] : memref<16x32xf32, #tpu.memory_space<vmem>>, vector<16x32xf32>
    %23 = arith.truncf %21 : vector<16x64xf32> to vector<16x64xbf16>
    %c0_12 = arith.constant 0 : index
    %c0_13 = arith.constant 0 : index
    %24 = vector.load %arg7[%c0_12, %c0_13] : memref<64x32xbf16, #tpu.memory_space<vmem>>, vector<64x32xbf16>
    %cst_14 = arith.constant dense<0.000000e+00> : vector<16x32xf32>
    %25 = tpu.matmul %23, %24, %cst_14 {dimension_numbers = #tpu.dot_dimension_numbers<[1], [0], [0], [1], [0, 0, 1, 1], [], []>} : vector<16x64xbf16>, vector<64x32xbf16>, vector<16x32xf32> -> vector<16x32xf32>
    %26 = arith.addf %22, %25 : vector<16x32xf32>
    %c0_15 = arith.constant 0 : index
    %c0_16 = arith.constant 0 : index
    %27 = vector.load %arg9[%c0_15, %c0_16] : memref<16x32xf32, #tpu.memory_space<vmem>>, vector<16x32xf32>
    tpu.vector_store %arg9[%c0_15, %c0_16], %26 {strides = array<i32>} : memref<16x32xf32, #tpu.memory_space<vmem>>, vector<16x32xf32>,
    %c0_i32_17 = arith.constant 0 : i32
    %28 = arith.cmpi eq, %arg1, %c0_i32_17 : i32
    %29 = arith.extui %28 : i1 to i32
    %c0_i32_18 = arith.constant 0 : i32
    %30 = arith.cmpi ne, %29, %c0_i32_18 : i32
    scf.if %30 {
      %c0_19 = arith.constant 0 : index
      %c0_20 = arith.constant 0 : index
      %31 = vector.load %arg9[%c0_19, %c0_20] : memref<16x32xf32, #tpu.memory_space<vmem>>, vector<16x32xf32>
      %c0_21 = arith.constant 0 : index
      %c0_22 = arith.constant 0 : index
      %32 = vector.load %arg8[%c0_21, %c0_22] : memref<1x32xf32, #tpu.memory_space<vmem>>, vector<1x32xf32>
      %33 = vector.broadcast %32 : vector<1x32xf32> to vector<16x32xf32>
      %34 = arith.addf %31, %33 : vector<16x32xf32>
      %c0_23 = arith.constant 0 : index
      %c0_24 = arith.constant 0 : index
      %35 = vector.load %arg9[%c0_23, %c0_24] : memref<16x32xf32, #tpu.memory_space<vmem>>, vector<16x32xf32>
      tpu.vector_store %arg9[%c0_23, %c0_24], %34 {strides = array<i32>} : memref<16x32xf32, #tpu.memory_space<vmem>>, vector<16x32xf32>,
    } else {
    }
    return
  }
  func.func @transform_0(%arg0: i32, %arg1: i32) -> (i32, i32) {
    %c0_i32 = arith.constant 0 : i32
    %c0_i32_0 = arith.constant 0 : i32
    return %arg0, %c0_i32 : i32, i32
  }
  func.func @transform_1(%arg0: i32, %arg1: i32) -> (i32, i32) {
    %c0_i32 = arith.constant 0 : i32
    %c0_i32_0 = arith.constant 0 : i32
    %c0_i32_1 = arith.constant 0 : i32
    return %c0_i32, %c0_i32_0 : i32, i32
  }
  func.func @transform_2(%arg0: i32, %arg1: i32) -> (i32, i32) {
    %c0_i32 = arith.constant 0 : i32
    %c0_i32_0 = arith.constant 0 : i32
    %c0_i32_1 = arith.constant 0 : i32
    return %c0_i32, %c0_i32_0 : i32, i32
  }
  func.func @transform_3(%arg0: i32, %arg1: i32) -> (i32, i32) {
    %c0_i32 = arith.constant 0 : i32
    %c0_i32_0 = arith.constant 0 : i32
    return %c0_i32, %arg1 : i32, i32
  }
  func.func @transform_4(%arg0: i32, %arg1: i32) -> (i32, i32) {
    %c0_i32 = arith.constant 0 : i32
    %c0_i32_0 = arith.constant 0 : i32
    return %c0_i32, %arg1 : i32, i32
  }
  func.func @transform_5(%arg0: i32, %arg1: i32) -> (i32, i32) {
    %c0_i32 = arith.constant 0 : i32
    %c0_i32_0 = arith.constant 0 : i32
    return %arg1, %c0_i32 : i32, i32
  }
  func.func @transform_6(%arg0: i32, %arg1: i32) -> (i32, i32) {
    %c0_i32 = arith.constant 0 : i32
    %c0_i32_0 = arith.constant 0 : i32
    %c0_i32_1 = arith.constant 0 : i32
    return %c0_i32, %c0_i32_0 : i32, i32
  }
  func.func @transform_7(%arg0: i32, %arg1: i32) -> (i32, i32) {
    %c0_i32 = arith.constant 0 : i32
    %c0_i32_0 = arith.constant 0 : i32
    return %arg0, %c0_i32 : i32, i32
  }
}

</mosaic_0001>

<llo_original>
// kernel: tpu_custom_call.1
$region0: #{tpu_custom_call.1}
  #allocation0 [shape = 'u32[]', space=smem, size = 0x4, offset = 0x4, fixed_abs, tag = 'smem constant byte address 0x4 - core index']
  #allocation1 [shape = 'u32[144,128]{1,0:T(1,128)}', space=vmem, size = 0x12000, scoped, tag = 'internal scratch']
  #allocation2 [shape = 'bf16[16,32]{1,0:T(16,128)(2,1)}', space=vmem, size = 0x1000, scoped, tag = 'scratch operand']
  %s0 = inlined_call_operand.vmem [shape: f32[16,32], index: 0, kind: input, shape index: {}]
  %s1 = inlined_call_operand.vmem [shape: f32[1,32], index: 1, kind: input, shape index: {}]
  %s2 = inlined_call_operand.vmem [shape: f32[1,32], index: 2, kind: input, shape index: {}]
  %s3 = inlined_call_operand.vmem [shape: bf16[32,64], index: 3, kind: input, shape index: {}]
  %s4 = inlined_call_operand.vmem [shape: f32[1,64], index: 4, kind: input, shape index: {}]
  %s5 = inlined_call_operand.vmem [shape: bf16[64,32], index: 5, kind: input, shape index: {}]
  %s6 = inlined_call_operand.vmem [shape: f32[1,32], index: 6, kind: input, shape index: {}]
  %s7 = inlined_call_operand.hbm [shape: f32[16,32], index: 7, kind: output, shape index: {}]
  %s8 = sld [smem:[#allocation0]]
  $region46: #{tpu_custom_call.1} parent=0
    _
  %s10 = ssub.s32 1, %s8
  %s11 = scalar_select 0, %s10, %s8
  $region1: #{tpu_custom_call.1} parent=0
    #allocation3 [shape = 'u8[8192]{0}', space=vmem, size = 0x2000, scoped, tag = 'output window, operand 0, single buffered']
    #allocation4 [shape = 's32[1]{0}', space=sflag, size = 0x4, scoped, tag = 'scoped memory for tpu_custom_call.1']
    %12 = vsyncpa [#allocation4], 0
    // Predicated region
    $region2: #{tpu_custom_call.1} parent=1 // pred_check
      _
    $region3: #{tpu_custom_call.1} parent=1 // pred_check_branch
      %14 = sbr.rel (0) target = $region5
    $region4: #{tpu_custom_call.1} parent=1 // pred_region
      _
    $region5: #{tpu_custom_call.1} parent=1 // pred_fallthru
      _
    // Predicated region
    $region6: #{tpu_custom_call.1} parent=1 // pred_check
      _
    $region7: #{tpu_custom_call.1} parent=1 // pred_check_branch
      %16 = sbr.rel (0) target = $region9
    $region8: #{tpu_custom_call.1} parent=1 // pred_region
      _
    $region9: #{tpu_custom_call.1} parent=1 // pred_fallthru
      _
    // Predicated region
    $region10: #{tpu_custom_call.1} parent=1 // pred_check
      _
    $region11: #{tpu_custom_call.1} parent=1 // pred_check_branch
      %18 = sbr.rel (0) target = $region13
    $region12: #{tpu_custom_call.1} parent=1 // pred_region
      _
    $region13: #{tpu_custom_call.1} parent=1 // pred_fallthru
      _
    // Predicated region
    $region14: #{tpu_custom_call.1} parent=1 // pred_check
      _
    $region15: #{tpu_custom_call.1} parent=1 // pred_check_branch
      %20 = sbr.rel (0) target = $region17
    $region16: #{tpu_custom_call.1} parent=1 // pred_region
      _
    $region17: #{tpu_custom_call.1} parent=1 // pred_fallthru
      _
    // Predicated region
    $region18: #{tpu_custom_call.1} parent=1 // pred_check
      _
    $region19: #{tpu_custom_call.1} parent=1 // pred_check_branch
      %22 = sbr.rel (0) target = $region21
    $region20: #{tpu_custom_call.1} parent=1 // pred_region
      _
    $region21: #{tpu_custom_call.1} parent=1 // pred_fallthru
      _
    // Predicated region
    $region22: #{tpu_custom_call.1} parent=1 // pred_check
      _
    $region23: #{tpu_custom_call.1} parent=1 // pred_check_branch
      %24 = sbr.rel (0) target = $region25
    $region24: #{tpu_custom_call.1} parent=1 // pred_region
      _
    $region25: #{tpu_custom_call.1} parent=1 // pred_fallthru
      _
    // Predicated region
    $region26: #{tpu_custom_call.1} parent=1 // pred_check
      _
    $region27: #{tpu_custom_call.1} parent=1 // pred_check_branch
      %26 = sbr.rel (0) target = $region29
    $region28: #{tpu_custom_call.1} parent=1 // pred_region
      _
    $region29: #{tpu_custom_call.1} parent=1 // pred_fallthru
      _
    %p28 = scmp.eq.s32.totalorder 0, 0
    // Predicated region
    $region30: #{tpu_custom_call.1} parent=1 // pred_check
      %p29 = pneg %p28
    $region31: #{tpu_custom_call.1} parent=1 // pred_check_branch
      %31 = sbr.rel (%p29) target = $region33
    $region32: #{tpu_custom_call.1} parent=1 // pred_region
      %v32 = vld [vmem:[%s0] sm:$0xff]
      %v33 = vld [vmem:[%s0 + $0x8] sm:$0xff]
      %vm34 = vcmask 261120
      %v35 = vsel %vm34, %v32, 0.0
      %36 = vadd.xlane.f32.xlu0 %v35
      %v37 = vpop.xlane.xlu0 %36
      %v38 = vsel %vm34, %v33, 0.0
      %39 = vadd.xlane.f32.xlu0 %v38
      %v40 = vpop.xlane.xlu0 %39
      %v41 = vrcp.pop 32.0
      %v42 = vmul.f32 %v37, %v41
      %v43 = vmul.f32 %v40, %v41
      %v44 = vsub.f32 %v32, %v42
      %v45 = vsub.f32 %v33, %v43
      %v46 = vmul.f32 %v44, %v44
      %v47 = vmul.f32 %v45, %v45
      %v48 = vsel %vm34, %v46, 0.0
      %49 = vadd.xlane.f32.xlu0 %v48
      %v50 = vpop.xlane.xlu0 %49
      %v51 = vsel %vm34, %v47, 0.0
      %52 = vadd.xlane.f32.xlu0 %v51
      %v53 = vpop.xlane.xlu0 %52
      %v54 = vmul.f32 %v50, %v41
      %v55 = vmul.f32 %v53, %v41
      %v56 = vadd.f32 %v54, 1e-05
      %v57 = vadd.f32 %v55, 1e-05
      %v58 = vrsqrt.pop %v56
      %v59 = vrsqrt.pop %v57
      %v60 = vmul.f32 %v44, %v58
      %v61 = vmul.f32 %v45, %v59
      %v62 = vld [vmem:[%s1] sm:$0x1]
      %v64 = vlaneseq
      %v65 = vshrl.u32 %v64, 7
      %v66 = vsub.s32 0, %v65
      %v67 = vrot.slane %v62, %v66
      %v69 = vmul.f32 %v60, %v67
      %v70 = vmul.f32 %v61, %v67
      %v71 = vld [vmem:[%s2] sm:$0x1]
      %v73 = vlaneseq
      %v74 = vshrl.u32 %v73, 7
      %v75 = vsub.s32 0, %v74
      %v76 = vrot.slane %v71, %v75
      %v78 = vadd.f32 %v69, %v76
      %v79 = vadd.f32 %v70, %v76
      %v80 = vpack.c.bf16 %v79, %v78
      %81 = vst.msk [vmem:[#allocation2] sm:$0xff] %vm34, %v80
      %82 = vst.msk [vmem:[#allocation3] sm:$0xff] %vm34, 0.0
      %83 = vst.msk [vmem:[#allocation3 + $0x8] sm:$0xff] %vm34, 0.0
    $region33: #{tpu_custom_call.1} parent=1 // pred_fallthru
      _
    %v84 = vld [vmem:[#allocation2] sm:$0xff]
    %v85 = vld [vmem:[%s3] sm:$0xf]
    %v86 = vld [vmem:[%s3 + $0x4] sm:$0xf]
    %v87 = vld [vmem:[%s3 + $0x8] sm:$0xf]
    %v88 = vld [vmem:[%s3 + $0xc] sm:$0xf]
    %v89 = vld [vmem:[%s4] sm:$0x1]
    %v91 = vlaneseq
    %v92 = vshrl.u32 %v91, 7
    %v93 = vsub.s32 0, %v92
    %v94 = vrot.slane %v89, %v93
    %v100 = vunpack.c.l.b16 %v85
    %v101 = vunpack.c.l.b16 %v86
    %v102 = vunpack.c.l.b16 %v87
    %v103 = vunpack.c.l.b16 %v88
    %v104 = vpack.c.b16 %v101, %v100
    %v105 = vpack.c.b16 %v103, %v102
    %vm108 = vcmask 261120
    %v110 = vsel %vm108, %v84, 0
    %112 = vmatprep.subr.bf16.mxu0 0
    %113 = vmatpush1.bf16.msra.mxu0 %v104
    %114 = vmatprep.subr.bf16.mxu0 0
    %115 = vmatpush1.bf16.msra.mxu0 %v105
    %116 = vmatprep.subr.bf16.mxu0 0
    %117 = vmatpush1.bf16.msra.mxu0 0
    %118 = vmatprep.subr.bf16.mxu0 0
    %119 = vmatpush1.bf16.msra.mxu0 0
    %120 = vmatprep.subr.bf16.mxu0 0
    %121 = vmatpush1.bf16.msra.mxu0 0
    %122 = vmatprep.subr.bf16.mxu0 0
    %123 = vmatpush1.bf16.msra.mxu0 0
    %124 = vmatprep.subr.bf16.mxu0 0
    %125 = vmatpush1.bf16.msra.mxu0 0
    %126 = vmatprep.subr.bf16.mxu0 0
    %127 = vmatpush1.bf16.msra.mxu0 0
    %128 = vmatprep.subr.bf16.mxu0 0
    %129 = vmatpush1.bf16.msra.mxu0 0
    %130 = vmatprep.subr.bf16.mxu0 0
    %131 = vmatpush1.bf16.msra.mxu0 0
    %132 = vmatprep.subr.bf16.mxu0 0
    %133 = vmatpush1.bf16.msra.mxu0 0
    %134 = vmatprep.subr.bf16.mxu0 0
    %135 = vmatpush1.bf16.msra.mxu0 0
    %136 = vmatprep.subr.bf16.mxu0 0
    %137 = vmatpush1.bf16.msra.mxu0 0
    %138 = vmatprep.subr.bf16.mxu0 0
    %139 = vmatpush1.bf16.msra.mxu0 0
    %140 = vmatprep.subr.bf16.mxu0 0
    %141 = vmatpush1.bf16.msra.mxu0 0
    %142 = vmatprep.subr.bf16.mxu0 0
    %143 = vmatpush1.bf16.msra.mxu0 0
    %144 = vmatprep.mubr.bf16.mxu0 0
    %145 = vmatmul.mubr.bf16.gmra.mrb[0].mxu0 %v110
    %v146 = vpop.f32.mrb[0].mxu0
    %v147 = vadd.f32 %v94, %v146
    %v148 = vpop.f32.mrb[0].mxu0
    %v149 = vpop.f32.mrb[0].mxu0
    %v150 = vadd.f32 %v94, %v149
    %v151 = vpop.f32.mrb[0].mxu0
    %152 = vdwg.mxu0
    %v153 = vmul.f32 %v147, %v147
    %v154 = vmul.f32 %v150, %v150
    %v155 = vmul.f32 %v147, %v153
    %v156 = vmul.f32 %v150, %v154
    %v157 = vmul.f32 %v155, 0.044715
    %v158 = vmul.f32 %v156, 0.044715
    %v159 = vadd.f32 %v147, %v157
    %v160 = vadd.f32 %v150, %v158
    %v161 = vmul.f32 %v159, 0.7978846
    %v162 = vmul.f32 %v160, 0.7978846
    %v163 = vtanh.pop %v161
    %v164 = vtanh.pop %v162
    %v165 = vadd.f32 %v163, 1.0
    %v166 = vadd.f32 %v164, 1.0
    %v167 = vmul.f32 %v165, 0.5
    %v168 = vmul.f32 %v166, 0.5
    %v169 = vmul.f32 %v147, %v167
    %v170 = vmul.f32 %v150, %v168
    %v171 = vld [vmem:[#allocation3] sm:$0xff]
    %v172 = vld [vmem:[#allocation3 + $0x8] sm:$0xff]
    %v173 = vpack.c.bf16 %v170, %v169
    %v174 = vld [vmem:[%s5] sm:$0xf]
    %v175 = vld [vmem:[%s5 + $0x4] sm:$0xf]
    %v176 = vld [vmem:[%s5 + $0x8] sm:$0xf]
    %v177 = vld [vmem:[%s5 + $0xc] sm:$0xf]
    %v178 = vld [vmem:[%s5 + $0x10] sm:$0xf]
    %v179 = vld [vmem:[%s5 + $0x14] sm:$0xf]
    %v180 = vld [vmem:[%s5 + $0x18] sm:$0xf]
    %v181 = vld [vmem:[%s5 + $0x1c] sm:$0xf]
    %v190 = vunpack.c.l.b16 %v174
    %v191 = vunpack.c.l.b16 %v175
    %v192 = vunpack.c.l.b16 %v176
    %v193 = vunpack.c.l.b16 %v177
    %v194 = vunpack.c.l.b16 %v178
    %v195 = vunpack.c.l.b16 %v179
    %v196 = vunpack.c.l.b16 %v180
    %v197 = vunpack.c.l.b16 %v181
    %v198 = vpack.c.b16 %v191, %v190
    %v199 = vpack.c.b16 %v193, %v192
    %v200 = vpack.c.b16 %v195, %v194
    %v201 = vpack.c.b16 %v197, %v196
    %vm206 = vcmask 523264
    %v208 = vsel %vm206, %v173, 0
    %210 = vmatprep.subr.bf16.mxu0 0
    %211 = vmatpush1.bf16.msra.mxu0 %v198
    %212 = vmatprep.subr.bf16.mxu0 0
    %213 = vmatpush1.bf16.msra.mxu0 %v199
    %214 = vmatprep.subr.bf16.mxu0 0
    %215 = vmatpush1.bf16.msra.mxu0 %v200
    %216 = vmatprep.subr.bf16.mxu0 0
    %217 = vmatpush1.bf16.msra.mxu0 %v201
    %218 = vmatprep.subr.bf16.mxu0 0
    %219 = vmatpush1.bf16.msra.mxu0 0
    %220 = vmatprep.subr.bf16.mxu0 0
    %221 = vmatpush1.bf16.msra.mxu0 0
    %222 = vmatprep.subr.bf16.mxu0 0
    %223 = vmatpush1.bf16.msra.mxu0 0
    %224 = vmatprep.subr.bf16.mxu0 0
    %225 = vmatpush1.bf16.msra.mxu0 0
    %226 = vmatprep.subr.bf16.mxu0 0
    %227 = vmatpush1.bf16.msra.mxu0 0
    %228 = vmatprep.subr.bf16.mxu0 0
    %229 = vmatpush1.bf16.msra.mxu0 0
    %230 = vmatprep.subr.bf16.mxu0 0
    %231 = vmatpush1.bf16.msra.mxu0 0
    %232 = vmatprep.subr.bf16.mxu0 0
    %233 = vmatpush1.bf16.msra.mxu0 0
    %234 = vmatprep.subr.bf16.mxu0 0
    %235 = vmatpush1.bf16.msra.mxu0 0
    %236 = vmatprep.subr.bf16.mxu0 0
    %237 = vmatpush1.bf16.msra.mxu0 0
    %238 = vmatprep.subr.bf16.mxu0 0
    %239 = vmatpush1.bf16.msra.mxu0 0
    %240 = vmatprep.subr.bf16.mxu0 0
    %241 = vmatpush1.bf16.msra.mxu0 0
    %242 = vmatprep.mubr.bf16.mxu0 0
    %243 = vmatmul.mubr.bf16.gmra.mrb[0].mxu0 %v208
    %v244 = vpop.f32.mrb[0].mxu0
    %v245 = vadd.f32 0.0, %v244
    %v246 = vpop.f32.mrb[0].mxu0
    %v247 = vpop.f32.mrb[0].mxu0
    %v248 = vadd.f32 0.0, %v247
    %v249 = vpop.f32.mrb[0].mxu0
    %250 = vdwg.mxu0
    %v251 = vadd.f32 %v171, %v245
    %v252 = vadd.f32 %v172, %v248
    %253 = vst.msk [vmem:[#allocation3] sm:$0xff] %vm108, %v251
    %254 = vst.msk [vmem:[#allocation3 + $0x8] sm:$0xff] %vm108, %v252
    // Predicated region
    $region34: #{tpu_custom_call.1} parent=1 // pred_check
      %p255 = pneg %p28
    $region35: #{tpu_custom_call.1} parent=1 // pred_check_branch
      %257 = sbr.rel (%p255) target = $region37
    $region36: #{tpu_custom_call.1} parent=1 // pred_region
      %v258 = vld [vmem:[#allocation3] sm:$0xff]
      %v259 = vld [vmem:[#allocation3 + $0x8] sm:$0xff]
      %v260 = vld [vmem:[%s6] sm:$0x1]
      %v262 = vlaneseq
      %v263 = vshrl.u32 %v262, 7
      %v264 = vsub.s32 0, %v263
      %v265 = vrot.slane %v260, %v264
      %v267 = vadd.f32 %v258, %v265
      %v268 = vadd.f32 %v259, %v265
      %269 = vst.msk [vmem:[#allocation3] sm:$0xff] %vm108, %v267
      %270 = vst.msk [vmem:[#allocation3 + $0x8] sm:$0xff] %vm108, %v268
    $region37: #{tpu_custom_call.1} parent=1 // pred_fallthru
      _
    // Predicated region
    $region38: #{tpu_custom_call.1} parent=1 // pred_check
      _
    $region39: #{tpu_custom_call.1} parent=1 // pred_check_branch
      %272 = sbr.rel (0) target = $region41
    $region40: #{tpu_custom_call.1} parent=1 // pred_region
      %s274 = ssub.s32 256, 256
      %275 = vsyncadd [#allocation4], %s274
      %s276 = sshll.u32 [#allocation3], 4
      %s277 = int_to_ptr.vmem [resolvable:$true] %s276
      %282 = dma.vmem_to_hbm [thread:$0]  %s277, 256, %s7, [#allocation4], 128, 128, 8
    $region41: #{tpu_custom_call.1} parent=1 // pred_fallthru
      _
    // Predicated region
    $region42: #{tpu_custom_call.1} parent=1 // pred_check
      _
    $region43: #{tpu_custom_call.1} parent=1 // pred_check_branch
      %284 = sbr.rel (0) target = $region45
    $region44: #{tpu_custom_call.1} parent=1 // pred_region
      %285 = dma.done [#allocation4], 256
    $region45: #{tpu_custom_call.1} parent=1 // pred_fallthru
      _
    %286 = vsyncpa [#allocation4], 1

// kernel: tpu_custom_call.1
$region0: #{tpu_custom_call.1}
  #allocation0 [shape = 'u32[]', space=smem, size = 0x4, offset = 0x4, fixed_abs, tag = 'smem constant byte address 0x4 - core index']
  #allocation1 [shape = 'u32[144,128]{1,0:T(1,128)}', space=vmem, size = 0x12000, scoped, tag = 'internal scratch']
  #allocation2 [shape = 'bf16[16,32]{1,0:T(16,128)(2,1)}', space=vmem, size = 0x1000, scoped, tag = 'scratch operand']
  %s0 = inlined_call_operand.vmem [shape: f32[16,32], index: 0, kind: input, shape index: {}]
  %s1 = inlined_call_operand.vmem [shape: f32[1,32], index: 1, kind: input, shape index: {}]
  %s2 = inlined_call_operand.vmem [shape: f32[1,32], index: 2, kind: input, shape index: {}]
  %s3 = inlined_call_operand.vmem [shape: bf16[32,64], index: 3, kind: input, shape index: {}]
  %s4 = inlined_call_operand.vmem [shape: f32[1,64], index: 4, kind: input, shape index: {}]
  %s5 = inlined_call_operand.vmem [shape: bf16[64,32], index: 5, kind: input, shape index: {}]
  %s6 = inlined_call_operand.vmem [shape: f32[1,32], index: 6, kind: input, shape index: {}]
  %s7 = inlined_call_operand.hbm [shape: f32[16,32], index: 7, kind: output, shape index: {}]
  %s8 = sld [smem:[#allocation0]]
  $region46: #{tpu_custom_call.1} parent=0
    _
  %s10 = ssub.s32 1, %s8
  %s11 = scalar_select 0, %s10, %s8
  $region1: #{tpu_custom_call.1} parent=0
    #allocation3 [shape = 'u8[8192]{0}', space=vmem, size = 0x2000, scoped, tag = 'output window, operand 0, single buffered']
    #allocation4 [shape = 's32[1]{0}', space=sflag, size = 0x4, scoped, tag = 'scoped memory for tpu_custom_call.1']
    %12 = vsyncpa [#allocation4], 0
    // Predicated region
    $region2: #{tpu_custom_call.1} parent=1 // pred_check
      _
    $region3: #{tpu_custom_call.1} parent=1 // pred_check_branch
      %14 = sbr.rel (0) target = $region5
    $region4: #{tpu_custom_call.1} parent=1 // pred_region
      _
    $region5: #{tpu_custom_call.1} parent=1 // pred_fallthru
      _
    // Predicated region
    $region6: #{tpu_custom_call.1} parent=1 // pred_check
      _
    $region7: #{tpu_custom_call.1} parent=1 // pred_check_branch
      %16 = sbr.rel (0) target = $region9
    $region8: #{tpu_custom_call.1} parent=1 // pred_region
      _
    $region9: #{tpu_custom_call.1} parent=1 // pred_fallthru
      _
    // Predicated region
    $region10: #{tpu_custom_call.1} parent=1 // pred_check
      _
    $region11: #{tpu_custom_call.1} parent=1 // pred_check_branch
      %18 = sbr.rel (0) target = $region13
    $region12: #{tpu_custom_call.1} parent=1 // pred_region
      _
    $region13: #{tpu_custom_call.1} parent=1 // pred_fallthru
      _
    // Predicated region
    $region14: #{tpu_custom_call.1} parent=1 // pred_check
      _
    $region15: #{tpu_custom_call.1} parent=1 // pred_check_branch
      %20 = sbr.rel (0) target = $region17
    $region16: #{tpu_custom_call.1} parent=1 // pred_region
      _
    $region17: #{tpu_custom_call.1} parent=1 // pred_fallthru
      _
    // Predicated region
    $region18: #{tpu_custom_call.1} parent=1 // pred_check
      _
    $region19: #{tpu_custom_call.1} parent=1 // pred_check_branch
      %22 = sbr.rel (0) target = $region21
    $region20: #{tpu_custom_call.1} parent=1 // pred_region
      _
    $region21: #{tpu_custom_call.1} parent=1 // pred_fallthru
      _
    // Predicated region
    $region22: #{tpu_custom_call.1} parent=1 // pred_check
      _
    $region23: #{tpu_custom_call.1} parent=1 // pred_check_branch
      %24 = sbr.rel (0) target = $region25
    $region24: #{tpu_custom_call.1} parent=1 // pred_region
      _
    $region25: #{tpu_custom_call.1} parent=1 // pred_fallthru
      _
    // Predicated region
    $region26: #{tpu_custom_call.1} parent=1 // pred_check
      _
    $region27: #{tpu_custom_call.1} parent=1 // pred_check_branch
      %26 = sbr.rel (0) target = $region29
    $region28: #{tpu_custom_call.1} parent=1 // pred_region
      _
    $region29: #{tpu_custom_call.1} parent=1 // pred_fallthru
      _
    %p28 = scmp.eq.s32.totalorder 0, 0
    // Predicated region
    $region30: #{tpu_custom_call.1} parent=1 // pred_check
      %p29 = pneg %p28
    $region31: #{tpu_custom_call.1} parent=1 // pred_check_branch
      %31 = sbr.rel (%p29) target = $region33
    $region32: #{tpu_custom_call.1} parent=1 // pred_region
      %v32 = vld [vmem:[%s0] sm:$0xff]
      %v33 = vld [vmem:[%s0 + $0x8] sm:$0xff]
      %vm34 = vcmask 261120
      %v35 = vsel %vm34, %v32, 0.0
      %36 = vadd.xlane.f32.xlu0 %v35
      %v37 = vpop.xlane.xlu0 %36
      %v38 = vsel %vm34, %v33, 0.0
      %39 = vadd.xlane.f32.xlu0 %v38
      %v40 = vpop.xlane.xlu0 %39
      %v41 = vrcp.pop 32.0
      %v42 = vmul.f32 %v37, %v41
      %v43 = vmul.f32 %v40, %v41
      %v44 = vsub.f32 %v32, %v42
      %v45 = vsub.f32 %v33, %v43
      %v46 = vmul.f32 %v44, %v44
      %v47 = vmul.f32 %v45, %v45
      %v48 = vsel %vm34, %v46, 0.0
      %49 = vadd.xlane.f32.xlu0 %v48
      %v50 = vpop.xlane.xlu0 %49
      %v51 = vsel %vm34, %v47, 0.0
      %52 = vadd.xlane.f32.xlu0 %v51
      %v53 = vpop.xlane.xlu0 %52
      %v54 = vmul.f32 %v50, %v41
      %v55 = vmul.f32 %v53, %v41
      %v56 = vadd.f32 %v54, 1e-05
      %v57 = vadd.f32 %v55, 1e-05
      %v58 = vrsqrt.pop %v56
      %v59 = vrsqrt.pop %v57
      %v60 = vmul.f32 %v44, %v58
      %v61 = vmul.f32 %v45, %v59
      %v62 = vld [vmem:[%s1] sm:$0x1]
      %v64 = vlaneseq
      %v65 = vshrl.u32 %v64, 7
      %v66 = vsub.s32 0, %v65
      %v67 = vrot.slane %v62, %v66
      %v69 = vmul.f32 %v60, %v67
      %v70 = vmul.f32 %v61, %v67
      %v71 = vld [vmem:[%s2] sm:$0x1]
      %v73 = vlaneseq
      %v74 = vshrl.u32 %v73, 7
      %v75 = vsub.s32 0, %v74
      %v76 = vrot.slane %v71, %v75
      %v78 = vadd.f32 %v69, %v76
      %v79 = vadd.f32 %v70, %v76
      %v80 = vpack.c.bf16 %v79, %v78
      %81 = vst.msk [vmem:[#allocation2] sm:$0xff] %vm34, %v80
      %82 = vst.msk [vmem:[#allocation3] sm:$0xff] %vm34, 0.0
      %83 = vst.msk [vmem:[#allocation3 + $0x8] sm:$0xff] %vm34, 0.0
    $region33: #{tpu_custom_call.1} parent=1 // pred_fallthru
      _
    %v84 = vld [vmem:[#allocation2] sm:$0xff]
    %v85 = vld [vmem:[%s3] sm:$0xf]
    %v86 = vld [vmem:[%s3 + $0x4] sm:$0xf]
    %v87 = vld [vmem:[%s3 + $0x8] sm:$0xf]
    %v88 = vld [vmem:[%s3 + $0xc] sm:$0xf]
    %v89 = vld [vmem:[%s4] sm:$0x1]
    %v91 = vlaneseq
    %v92 = vshrl.u32 %v91, 7
    %v93 = vsub.s32 0, %v92
    %v94 = vrot.slane %v89, %v93
    %v100 = vunpack.c.l.b16 %v85
    %v101 = vunpack.c.l.b16 %v86
    %v102 = vunpack.c.l.b16 %v87
    %v103 = vunpack.c.l.b16 %v88
    %v104 = vpack.c.b16 %v101, %v100
    %v105 = vpack.c.b16 %v103, %v102
    %vm108 = vcmask 261120
    %v110 = vsel %vm108, %v84, 0
    %112 = vmatprep.subr.bf16.mxu0 0
    %113 = vmatpush1.bf16.msra.mxu0 %v104
    %114 = vmatprep.subr.bf16.mxu0 0
    %115 = vmatpush1.bf16.msra.mxu0 %v105
    %116 = vmatprep.subr.bf16.mxu0 0
    %117 = vmatpush1.bf16.msra.mxu0 0
    %118 = vmatprep.subr.bf16.mxu0 0
    %119 = vmatpush1.bf16.msra.mxu0 0
    %120 = vmatprep.subr.bf16.mxu0 0
    %121 = vmatpush1.bf16.msra.mxu0 0
    %122 = vmatprep.subr.bf16.mxu0 0
    %123 = vmatpush1.bf16.msra.mxu0 0
    %124 = vmatprep.subr.bf16.mxu0 0
    %125 = vmatpush1.bf16.msra.mxu0 0
    %126 = vmatprep.subr.bf16.mxu0 0
    %127 = vmatpush1.bf16.msra.mxu0 0
    %128 = vmatprep.subr.bf16.mxu0 0
    %129 = vmatpush1.bf16.msra.mxu0 0
    %130 = vmatprep.subr.bf16.mxu0 0
    %131 = vmatpush1.bf16.msra.mxu0 0
    %132 = vmatprep.subr.bf16.mxu0 0
    %133 = vmatpush1.bf16.msra.mxu0 0
    %134 = vmatprep.subr.bf16.mxu0 0
    %135 = vmatpush1.bf16.msra.mxu0 0
    %136 = vmatprep.subr.bf16.mxu0 0
    %137 = vmatpush1.bf16.msra.mxu0 0
    %138 = vmatprep.subr.bf16.mxu0 0
    %139 = vmatpush1.bf16.msra.mxu0 0
    %140 = vmatprep.subr.bf16.mxu0 0
    %141 = vmatpush1.bf16.msra.mxu0 0
    %142 = vmatprep.subr.bf16.mxu0 0
    %143 = vmatpush1.bf16.msra.mxu0 0
    %144 = vmatprep.mubr.bf16.mxu0 0
    %145 = vmatmul.mubr.bf16.gmra.mrb[0].mxu0 %v110
    %v146 = vpop.f32.mrb[0].mxu0
    %v147 = vadd.f32 %v94, %v146
    %v148 = vpop.f32.mrb[0].mxu0
    %v149 = vpop.f32.mrb[0].mxu0
    %v150 = vadd.f32 %v94, %v149
    %v151 = vpop.f32.mrb[0].mxu0
    %152 = vdwg.mxu0
    %v153 = vmul.f32 %v147, %v147
    %v154 = vmul.f32 %v150, %v150
    %v155 = vmul.f32 %v147, %v153
    %v156 = vmul.f32 %v150, %v154
    %v157 = vmul.f32 %v155, 0.044715
    %v158 = vmul.f32 %v156, 0.044715
    %v159 = vadd.f32 %v147, %v157
    %v160 = vadd.f32 %v150, %v158
    %v161 = vmul.f32 %v159, 0.7978846
    %v162 = vmul.f32 %v160, 0.7978846
    %v163 = vtanh.pop %v161
    %v164 = vtanh.pop %v162
    %v165 = vadd.f32 %v163, 1.0
    %v166 = vadd.f32 %v164, 1.0
    %v167 = vmul.f32 %v165, 0.5
    %v168 = vmul.f32 %v166, 0.5
    %v169 = vmul.f32 %v147, %v167
    %v170 = vmul.f32 %v150, %v168
    %v171 = vld [vmem:[#allocation3] sm:$0xff]
    %v172 = vld [vmem:[#allocation3 + $0x8] sm:$0xff]
    %v173 = vpack.c.bf16 %v170, %v169
    %v174 = vld [vmem:[%s5] sm:$0xf]
    %v175 = vld [vmem:[%s5 + $0x4] sm:$0xf]
    %v176 = vld [vmem:[%s5 + $0x8] sm:$0xf]
    %v177 = vld [vmem:[%s5 + $0xc] sm:$0xf]
    %v178 = vld [vmem:[%s5 + $0x10] sm:$0xf]
    %v179 = vld [vmem:[%s5 + $0x14] sm:$0xf]
    %v180 = vld [vmem:[%s5 + $0x18] sm:$0xf]
    %v181 = vld [vmem:[%s5 + $0x1c] sm:$0xf]
    %v190 = vunpack.c.l.b16 %v174
    %v191 = vunpack.c.l.b16 %v175
    %v192 = vunpack.c.l.b16 %v176
    %v193 = vunpack.c.l.b16 %v177
    %v194 = vunpack.c.l.b16 %v178
    %v195 = vunpack.c.l.b16 %v179
    %v196 = vunpack.c.l.b16 %v180
    %v197 = vunpack.c.l.b16 %v181
    %v198 = vpack.c.b16 %v191, %v190
    %v199 = vpack.c.b16 %v193, %v192
    %v200 = vpack.c.b16 %v195, %v194
    %v201 = vpack.c.b16 %v197, %v196
    %vm206 = vcmask 523264
    %v208 = vsel %vm206, %v173, 0
    %210 = vmatprep.subr.bf16.mxu0 0
    %211 = vmatpush1.bf16.msra.mxu0 %v198
    %212 = vmatprep.subr.bf16.mxu0 0
    %213 = vmatpush1.bf16.msra.mxu0 %v199
    %214 = vmatprep.subr.bf16.mxu0 0
    %215 = vmatpush1.bf16.msra.mxu0 %v200
    %216 = vmatprep.subr.bf16.mxu0 0
    %217 = vmatpush1.bf16.msra.mxu0 %v201
    %218 = vmatprep.subr.bf16.mxu0 0
    %219 = vmatpush1.bf16.msra.mxu0 0
    %220 = vmatprep.subr.bf16.mxu0 0
    %221 = vmatpush1.bf16.msra.mxu0 0
    %222 = vmatprep.subr.bf16.mxu0 0
    %223 = vmatpush1.bf16.msra.mxu0 0
    %224 = vmatprep.subr.bf16.mxu0 0
    %225 = vmatpush1.bf16.msra.mxu0 0
    %226 = vmatprep.subr.bf16.mxu0 0
    %227 = vmatpush1.bf16.msra.mxu0 0
    %228 = vmatprep.subr.bf16.mxu0 0
    %229 = vmatpush1.bf16.msra.mxu0 0
    %230 = vmatprep.subr.bf16.mxu0 0
    %231 = vmatpush1.bf16.msra.mxu0 0
    %232 = vmatprep.subr.bf16.mxu0 0
    %233 = vmatpush1.bf16.msra.mxu0 0
    %234 = vmatprep.subr.bf16.mxu0 0
    %235 = vmatpush1.bf16.msra.mxu0 0
    %236 = vmatprep.subr.bf16.mxu0 0
    %237 = vmatpush1.bf16.msra.mxu0 0
    %238 = vmatprep.subr.bf16.mxu0 0
    %239 = vmatpush1.bf16.msra.mxu0 0
    %240 = vmatprep.subr.bf16.mxu0 0
    %241 = vmatpush1.bf16.msra.mxu0 0
    %242 = vmatprep.mubr.bf16.mxu0 0
    %243 = vmatmul.mubr.bf16.gmra.mrb[0].mxu0 %v208
    %v244 = vpop.f32.mrb[0].mxu0
    %v245 = vadd.f32 0.0, %v244
    %v246 = vpop.f32.mrb[0].mxu0
    %v247 = vpop.f32.mrb[0].mxu0
    %v248 = vadd.f32 0.0, %v247
    %v249 = vpop.f32.mrb[0].mxu0
    %250 = vdwg.mxu0
    %v251 = vadd.f32 %v171, %v245
    %v252 = vadd.f32 %v172, %v248
    %253 = vst.msk [vmem:[#allocation3] sm:$0xff] %vm108, %v251
    %254 = vst.msk [vmem:[#allocation3 + $0x8] sm:$0xff] %vm108, %v252
    // Predicated region
    $region34: #{tpu_custom_call.1} parent=1 // pred_check
      %p255 = pneg %p28
    $region35: #{tpu_custom_call.1} parent=1 // pred_check_branch
      %257 = sbr.rel (%p255) target = $region37
    $region36: #{tpu_custom_call.1} parent=1 // pred_region
      %v258 = vld [vmem:[#allocation3] sm:$0xff]
      %v259 = vld [vmem:[#allocation3 + $0x8] sm:$0xff]
      %v260 = vld [vmem:[%s6] sm:$0x1]
      %v262 = vlaneseq
      %v263 = vshrl.u32 %v262, 7
      %v264 = vsub.s32 0, %v263
      %v265 = vrot.slane %v260, %v264
      %v267 = vadd.f32 %v258, %v265
      %v268 = vadd.f32 %v259, %v265
      %269 = vst.msk [vmem:[#allocation3] sm:$0xff] %vm108, %v267
      %270 = vst.msk [vmem:[#allocation3 + $0x8] sm:$0xff] %vm108, %v268
    $region37: #{tpu_custom_call.1} parent=1 // pred_fallthru
      _
    // Predicated region
    $region38: #{tpu_custom_call.1} parent=1 // pred_check
      _
    $region39: #{tpu_custom_call.1} parent=1 // pred_check_branch
      %272 = sbr.rel (0) target = $region41
    $region40: #{tpu_custom_call.1} parent=1 // pred_region
      %s274 = ssub.s32 256, 256
      %275 = vsyncadd [#allocation4], %s274
      %s276 = sshll.u32 [#allocation3], 4
      %s277 = int_to_ptr.vmem [resolvable:$true] %s276
      %282 = dma.vmem_to_hbm [thread:$0]  %s277, 256, %s7, [#allocation4], 128, 128, 8
    $region41: #{tpu_custom_call.1} parent=1 // pred_fallthru
      _
    // Predicated region
    $region42: #{tpu_custom_call.1} parent=1 // pred_check
      _
    $region43: #{tpu_custom_call.1} parent=1 // pred_check_branch
      %284 = sbr.rel (0) target = $region45
    $region44: #{tpu_custom_call.1} parent=1 // pred_region
      %285 = dma.done [#allocation4], 256
    $region45: #{tpu_custom_call.1} parent=1 // pred_fallthru
      _
    %286 = vsyncpa [#allocation4], 1

</llo_original>
